<compile_context>
chip_gen: v6e
topology: v6e:2x2x1
jax: 0.10.0
libtpu: 0.0.40
codegen_flags: <defaults>
</compile_context>

<pallas_src>
import functools

import jax
import jax.numpy as jnp
from jax.experimental import pallas as pl
from jax.experimental.pallas import tpu as pltpu

_EPS = 1e-7          # small epsilon protecting divisions (synthetic choice)
_LANE = 128
_MAX_TILE_N = 16384  # 8 * 16384 * 4B = 512 KiB per f32 block (x2 double-buffer)


def _round_up(x, m):
    return ((x + m - 1) // m) * m


def _make_iou_loss_kernel(losstype: str, num: int, reduction: str, tile_n: int):
    """Kernel over one (8, tile_n) coords-first box tile; accumulates into o_ref."""
    inv_num = 1.0 / float(num)

    def kernel(b_ref, o_ref):
        i = pl.program_id(0)

        @pl.when(i == 0)
        def _init():
            o_ref[...] = jnp.zeros_like(o_ref)

        b = b_ref[...].astype(jnp.float32)            # [8, tile_n]
        tx1, ty1, tx2, ty2 = b[0:1, :], b[1:2, :], b[2:3, :], b[3:4, :]
        px1, py1, px2, py2 = b[4:5, :], b[5:6, :], b[6:7, :], b[7:8, :]

        # Intersection / union / IoU
        iw = jnp.maximum(jnp.minimum(tx2, px2) - jnp.maximum(tx1, px1), 0.0)
        ih = jnp.maximum(jnp.minimum(ty2, py2) - jnp.maximum(ty1, py1), 0.0)
        inter = iw * ih
        union = ((tx2 - tx1) * (ty2 - ty1) + (px2 - px1) * (py2 - py1)
                 - inter + _EPS)
        iou = inter * pl.reciprocal(union, approx=True)

        # Smallest enclosing box
        cw = jnp.maximum(tx2, px2) - jnp.minimum(tx1, px1)
        ch = jnp.maximum(ty2, py2) - jnp.minimum(ty1, py1)

        if losstype == 'Iou':
            metric = iou
        elif losstype == 'Giou':
            c_area = cw * ch + _EPS
            metric = iou - (c_area - union) * pl.reciprocal(c_area, approx=True)
        else:
            # Diou / Ciou share the normalized center-distance term
            c2 = cw * cw + ch * ch + _EPS
            rho2 = ((px1 + px2 - tx1 - tx2) ** 2 +
                    (py1 + py2 - ty1 - ty2) ** 2) * 0.25
            d_term = rho2 * pl.reciprocal(c2, approx=True)
            if losstype == 'Diou':
                metric = iou - d_term
            else:  # 'Ciou'
                at_t = jnp.arctan(
                    (tx2 - tx1) * pl.reciprocal(ty2 - ty1 + _EPS, approx=True))
                at_p = jnp.arctan(
                    (px2 - px1) * pl.reciprocal(py2 - py1 + _EPS, approx=True))
                v = (4.0 / (jnp.pi ** 2)) * (at_t - at_p) ** 2
                alpha = v * pl.reciprocal(1.0 - iou + v + _EPS, approx=True)
                metric = iou - (d_term + alpha * v)

        # Mask padded lanes (required once N is padded to the tile size) and
        # accumulate sum(metric); "1 - metric" is folded into the finalize step.
        lane = jax.lax.broadcasted_iota(jnp.int32, (1, tile_n), 1)
        valid = (lane + i * tile_n) < num
        tile_sum = jnp.sum(jnp.where(valid, metric, 0.0), axis=1, keepdims=True)
        o_ref[...] += tile_sum

        @pl.when(i == pl.num_programs(0) - 1)
        def _finalize():
            total = float(num) - o_ref[...]     # = sum(1 - metric) over valid boxes
            if reduction == 'mean':
                total = total * inv_num
            o_ref[...] = total

    return kernel


@functools.partial(jax.jit,
                   static_argnames=('losstype', 'reduction', 'max_tile_n'))
def iou_loss(target_bboxes, pred_bboxes, losstype='Giou', reduction='mean',
             max_tile_n=_MAX_TILE_N):
    """JAX/Pallas equivalent of IouLoss(losstype, reduction)(target, pred)."""
    assert target_bboxes.shape == pred_bboxes.shape
    assert target_bboxes.shape[-1] == 4
    num = target_bboxes.shape[0]

    # Ship half-precision inputs as-is (halves HBM bytes); otherwise f32.
    if target_bboxes.dtype in (jnp.bfloat16, jnp.float16):
        in_dtype = target_bboxes.dtype
    else:
        in_dtype = jnp.float32

    # One packed coords-first [8, N] array (single concat+transpose; fusible
    # into the pallas_call input via allow_input_fusion below).
    packed = jnp.concatenate([target_bboxes.astype(in_dtype),
                              pred_bboxes.astype(in_dtype)], axis=1).T  # [8, N]

    # Lane-dense tiling of the box axis; pad N up to a multiple of the tile.
    tile_n = _round_up(min(int(max_tile_n), _round_up(num, _LANE)), _LANE)
    n_pad = _round_up(max(num, 1), tile_n)
    if n_pad != num:
        packed = jnp.pad(packed, ((0, 0), (0, n_pad - num)))
    grid = (n_pad // tile_n,)

    kernel = _make_iou_loss_kernel(losstype, num, reduction, tile_n)

    out = pl.pallas_call(
        kernel,
        out_shape=jax.ShapeDtypeStruct((1, 1), jnp.float32),
        grid=grid,
        in_specs=[pl.BlockSpec((8, tile_n), lambda i: (0, i))],
        out_specs=pl.BlockSpec((1, 1), lambda i: (0, 0)),
        compiler_params=pltpu.CompilerParams(
            dimension_semantics=("arbitrary",),     # sequential accumulator
            allow_input_fusion=[True],              # fuse pack/transpose/pad
            vmem_limit_bytes=32 * 1024 * 1024,      # safe on v5e/v6e/v7x
        ),
    )(packed)
    return out[0, 0]


def _iou_loss_reference(target, pred, losstype='Giou', reduction='mean'):
    """Pure-JAX reference (exact divisions) for correctness checking."""
    t = target.astype(jnp.float32)
    p = pred.astype(jnp.float32)
    tx1, ty1, tx2, ty2 = t[:, 0], t[:, 1], t[:, 2], t[:, 3]
    px1, py1, px2, py2 = p[:, 0], p[:, 1], p[:, 2], p[:, 3]
    iw = jnp.maximum(jnp.minimum(tx2, px2) - jnp.maximum(tx1, px1), 0.0)
    ih = jnp.maximum(jnp.minimum(ty2, py2) - jnp.maximum(ty1, py1), 0.0)
    inter = iw * ih
    union = (tx2 - tx1) * (ty2 - ty1) + (px2 - px1) * (py2 - py1) - inter + _EPS
    iou = inter / union
    cw = jnp.maximum(tx2, px2) - jnp.minimum(tx1, px1)
    ch = jnp.maximum(ty2, py2) - jnp.minimum(ty1, py1)
    if losstype == 'Giou':
        c_area = cw * ch + _EPS
        metric = iou - (c_area - union) / c_area
    elif losstype == 'Iou':
        metric = iou
    else:
        c2 = cw * cw + ch * ch + _EPS
        rho2 = ((px1 + px2 - tx1 - tx2) ** 2 + (py1 + py2 - ty1 - ty2) ** 2) / 4.0
        if losstype == 'Diou':
            metric = iou - rho2 / c2
        else:
            v = (4.0 / (jnp.pi ** 2)) * (
                jnp.arctan((tx2 - tx1) / (ty2 - ty1 + _EPS)) -
                jnp.arctan((px2 - px1) / (py2 - py1 + _EPS))) ** 2
            alpha = v / (1.0 - iou + v + _EPS)
            metric = iou - (rho2 / c2 + alpha * v)
    loss = jnp.sum(1.0 - metric)
    return loss / t.shape[0] if reduction == 'mean' else loss


if __name__ == "__main__":
    key = jax.random.PRNGKey(0)
    k1, k2, k3, k4 = jax.random.split(key, 4)

    def make_boxes(kxy, kwh, n):
        xy = jax.random.uniform(kxy, (n, 2), minval=0.0, maxval=50.0)
        wh = jax.random.uniform(kwh, (n, 2), minval=1.0, maxval=50.0)
        return jnp.concatenate([xy, xy + wh], axis=1)        # [n, 4] x1y1x2y2

    N = 8
    target_bboxes = make_boxes(k1, k2, N)
    pred_bboxes = make_boxes(k3, k4, N)

    # Default module config is ('Giou', 'mean'); also exercise Iou / Diou.
    # (Tolerance loosened to cover approx-reciprocal error in the kernel.)
    for losstype in ('Giou', 'Iou', 'Diou'):
        loss = iou_loss(target_bboxes, pred_bboxes,
                        losstype=losstype, reduction='mean')
        loss = jax.block_until_ready(loss)
        ref = _iou_loss_reference(target_bboxes, pred_bboxes, losstype, 'mean')
        assert jnp.isfinite(loss), f"{losstype}: loss is not finite"
        assert jnp.allclose(loss, ref, rtol=2e-3, atol=2e-3), (losstype, loss, ref)

    # Multi-tile path: grid > 1 with lane padding + masked accumulation.
    kk = jax.random.split(jax.random.PRNGKey(1), 4)
    N2 = 300
    t2 = make_boxes(kk[0], kk[1], N2)
    p2 = make_boxes(kk[2], kk[3], N2)
    loss2 = jax.block_until_ready(
        iou_loss(t2, p2, losstype='Giou', reduction='mean', max_tile_n=128))
    ref2 = _iou_loss_reference(t2, p2, 'Giou', 'mean')
    assert jnp.isfinite(loss2), "multi-tile loss is not finite"
    assert jnp.allclose(loss2, ref2, rtol=2e-3, atol=2e-3), (loss2, ref2)

    print("KERNEL_OK")
</pallas_src>

<mosaic_0001>
module attributes {stable_mosaic.version = 11 : i64} {
  func.func @kernel(%arg0: i32, %arg1: memref<8x128xf32, #tpu.memory_space<vmem>>, %arg2: memref<1x1xf32, #tpu.memory_space<vmem>>) attributes {dimension_semantics = [#tpu.dimension_semantics<arbitrary>], iteration_bounds = array<i64: 1>, scalar_prefetch = 0 : i64, scratch_operands = 0 : i64, tpu.core_type = #tpu.core_type<tc>, window_params = [{transform_indices = @transform_0, window_bounds = array<i64: 8, 128>}, {pipeline_mode = #tpu.pipeline_mode<synchronous>, transform_indices = @transform_1, window_bounds = array<i64: 1, 1>}]} {
    %c0_i32 = arith.constant 0 : i32
    %0 = arith.cmpi eq, %arg0, %c0_i32 : i32
    %1 = arith.extui %0 : i1 to i32
    %c0_i32_0 = arith.constant 0 : i32
    %2 = arith.cmpi ne, %1, %c0_i32_0 : i32
    scf.if %2 {
      %cst_13 = arith.constant 0.000000e+00 : f32
      %64 = vector.broadcast %cst_13 : f32 to vector<1x1xf32>
      %c0_14 = arith.constant 0 : index
      %c0_15 = arith.constant 0 : index
      %65 = vector.load %arg2[%c0_14, %c0_15] : memref<1x1xf32, #tpu.memory_space<vmem>>, vector<1x1xf32>
      tpu.vector_store %arg2[%c0_14, %c0_15], %64 {strides = array<i32>} : memref<1x1xf32, #tpu.memory_space<vmem>>, vector<1x1xf32>,
    } else {
    }
    %c0 = arith.constant 0 : index
    %c0_1 = arith.constant 0 : index
    %3 = vector.load %arg1[%c0, %c0_1] : memref<8x128xf32, #tpu.memory_space<vmem>>, vector<8x128xf32>
    %4 = vector.extract_strided_slice %3 {offsets = [0, 0], sizes = [1, 128], strides = [1, 1]} : vector<8x128xf32> to vector<1x128xf32>
    %5 = vector.extract_strided_slice %3 {offsets = [1, 0], sizes = [1, 128], strides = [1, 1]} : vector<8x128xf32> to vector<1x128xf32>
    %6 = vector.extract_strided_slice %3 {offsets = [2, 0], sizes = [1, 128], strides = [1, 1]} : vector<8x128xf32> to vector<1x128xf32>
    %7 = vector.extract_strided_slice %3 {offsets = [3, 0], sizes = [1, 128], strides = [1, 1]} : vector<8x128xf32> to vector<1x128xf32>
    %8 = vector.extract_strided_slice %3 {offsets = [4, 0], sizes = [1, 128], strides = [1, 1]} : vector<8x128xf32> to vector<1x128xf32>
    %9 = vector.extract_strided_slice %3 {offsets = [5, 0], sizes = [1, 128], strides = [1, 1]} : vector<8x128xf32> to vector<1x128xf32>
    %10 = vector.extract_strided_slice %3 {offsets = [6, 0], sizes = [1, 128], strides = [1, 1]} : vector<8x128xf32> to vector<1x128xf32>
    %11 = vector.extract_strided_slice %3 {offsets = [7, 0], sizes = [1, 128], strides = [1, 1]} : vector<8x128xf32> to vector<1x128xf32>
    %12 = arith.minimumf %6, %10 : vector<1x128xf32>
    %13 = arith.maximumf %4, %8 : vector<1x128xf32>
    %14 = arith.subf %12, %13 : vector<1x128xf32>
    %cst = arith.constant 0.000000e+00 : f32
    %15 = vector.broadcast %cst : f32 to vector<1x128xf32>
    %16 = arith.maximumf %14, %15 : vector<1x128xf32>
    %17 = arith.minimumf %7, %11 : vector<1x128xf32>
    %18 = arith.maximumf %5, %9 : vector<1x128xf32>
    %19 = arith.subf %17, %18 : vector<1x128xf32>
    %cst_2 = arith.constant 0.000000e+00 : f32
    %20 = vector.broadcast %cst_2 : f32 to vector<1x128xf32>
    %21 = arith.maximumf %19, %20 : vector<1x128xf32>
    %22 = arith.mulf %16, %21 : vector<1x128xf32>
    %23 = arith.subf %6, %4 : vector<1x128xf32>
    %24 = arith.subf %7, %5 : vector<1x128xf32>
    %25 = arith.mulf %23, %24 : vector<1x128xf32>
    %26 = arith.subf %10, %8 : vector<1x128xf32>
    %27 = arith.subf %11, %9 : vector<1x128xf32>
    %28 = arith.mulf %26, %27 : vector<1x128xf32>
    %29 = arith.addf %25, %28 : vector<1x128xf32>
    %30 = arith.subf %29, %22 : vector<1x128xf32>
    %cst_3 = arith.constant 1.000000e-07 : f32
    %31 = vector.broadcast %cst_3 : f32 to vector<1x128xf32>
    %32 = arith.addf %30, %31 : vector<1x128xf32>
    %33 = tpu.reciprocal %32 {approx = true} : vector<1x128xf32> -> vector<1x128xf32>
    %34 = arith.mulf %22, %33 : vector<1x128xf32>
    %35 = arith.maximumf %6, %10 : vector<1x128xf32>
    %36 = arith.minimumf %4, %8 : vector<1x128xf32>
    %37 = arith.subf %35, %36 : vector<1x128xf32>
    %38 = arith.maximumf %7, %11 : vector<1x128xf32>
    %39 = arith.minimumf %5, %9 : vector<1x128xf32>
    %40 = arith.subf %38, %39 : vector<1x128xf32>
    %41 = arith.mulf %37, %40 : vector<1x128xf32>
    %cst_4 = arith.constant 1.000000e-07 : f32
    %42 = vector.broadcast %cst_4 : f32 to vector<1x128xf32>
    %43 = arith.addf %41, %42 : vector<1x128xf32>
    %44 = arith.subf %43, %32 : vector<1x128xf32>
    %45 = tpu.reciprocal %43 {approx = true} : vector<1x128xf32> -> vector<1x128xf32>
    %46 = arith.mulf %44, %45 : vector<1x128xf32>
    %47 = arith.subf %34, %46 : vector<1x128xf32>
    %48 = tpu.iota {dimensions = array<i32: 1>} : vector<1x128xi32>
    %c128_i32 = arith.constant 128 : i32
    %49 = arith.muli %arg0, %c128_i32 : i32
    %50 = vector.broadcast %49 : i32 to vector<1x128xi32>
    %51 = arith.addi %48, %50 : vector<1x128xi32>
    %c8_i32 = arith.constant 8 : i32
    %52 = vector.broadcast %c8_i32 : i32 to vector<1x128xi32>
    %53 = arith.cmpi slt, %51, %52 : vector<1x128xi32>
    %cst_5 = arith.constant 0.000000e+00 : f32
    %54 = vector.broadcast %cst_5 : f32 to vector<1x128xf32>
    %55 = arith.select %53, %47, %54 : vector<1x128xi1>, vector<1x128xf32>
    %cst_6 = arith.constant dense<0.000000e+00> : vector<1xf32>
    %56 = vector.multi_reduction <add>, %55, %cst_6 [1] : vector<1x128xf32> to vector<1xf32>
    %57 = vector.shape_cast %56 : vector<1xf32> to vector<1x1xf32>
    %c0_7 = arith.constant 0 : index
    %c0_8 = arith.constant 0 : index
    %58 = vector.load %arg2[%c0_7, %c0_8] : memref<1x1xf32, #tpu.memory_space<vmem>>, vector<1x1xf32>
    %59 = arith.addf %58, %57 : vector<1x1xf32>
    %c0_9 = arith.constant 0 : index
    %c0_10 = arith.constant 0 : index
    %60 = vector.load %arg2[%c0_9, %c0_10] : memref<1x1xf32, #tpu.memory_space<vmem>>, vector<1x1xf32>
    tpu.vector_store %arg2[%c0_9, %c0_10], %59 {strides = array<i32>} : memref<1x1xf32, #tpu.memory_space<vmem>>, vector<1x1xf32>,
    %c0_i32_11 = arith.constant 0 : i32
    %61 = arith.cmpi eq, %arg0, %c0_i32_11 : i32
    %62 = arith.extui %61 : i1 to i32
    %c0_i32_12 = arith.constant 0 : i32
    %63 = arith.cmpi ne, %62, %c0_i32_12 : i32
    scf.if %63 {
      %c0_13 = arith.constant 0 : index
      %c0_14 = arith.constant 0 : index
      %64 = vector.load %arg2[%c0_13, %c0_14] : memref<1x1xf32, #tpu.memory_space<vmem>>, vector<1x1xf32>
      %cst_15 = arith.constant 8.000000e+00 : f32
      %65 = vector.broadcast %cst_15 : f32 to vector<1x1xf32>
      %66 = arith.subf %65, %64 : vector<1x1xf32>
      %cst_16 = arith.constant 1.250000e-01 : f32
      %67 = vector.broadcast %cst_16 : f32 to vector<1x1xf32>
      %68 = arith.mulf %66, %67 : vector<1x1xf32>
      %c0_17 = arith.constant 0 : index
      %c0_18 = arith.constant 0 : index
      %69 = vector.load %arg2[%c0_17, %c0_18] : memref<1x1xf32, #tpu.memory_space<vmem>>, vector<1x1xf32>
      tpu.vector_store %arg2[%c0_17, %c0_18], %68 {strides = array<i32>} : memref<1x1xf32, #tpu.memory_space<vmem>>, vector<1x1xf32>,
    } else {
    }
    return
  }
  func.func @transform_0(%arg0: i32) -> (i32, i32) {
    %c0_i32 = arith.constant 0 : i32
    %c0_i32_0 = arith.constant 0 : i32
    return %c0_i32, %arg0 : i32, i32
  }
  func.func @transform_1(%arg0: i32) -> (i32, i32) {
    %c0_i32 = arith.constant 0 : i32
    %c0_i32_0 = arith.constant 0 : i32
    %c0_i32_1 = arith.constant 0 : i32
    return %c0_i32, %c0_i32_0 : i32, i32
  }
}

</mosaic_0001>

<llo_original>
// kernel: iou_loss.2
$region0: #{iou_loss.2}
  #allocation0 [shape = 'u32[]', space=smem, size = 0x4, offset = 0x4, fixed_abs, tag = 'smem constant byte address 0x4 - core index']
  #allocation1 [shape = 'u32[144,128]{1,0:T(1,128)}', space=vmem, size = 0x12000, scoped, tag = 'internal scratch']
  #allocation2 [shape = 'u32[2048]{0}', space=vmem, size = 0x2000, scoped, tag = 'scoped memory for iou_loss.2']
  #allocation3 [shape = 'u32[2048]{0}', space=vmem, size = 0x2000, scoped, tag = 'scoped memory for iou_loss.2']
  #allocation4 [shape = 'u32[2048]{0}', space=vmem, size = 0x2000, scoped, tag = 'scoped memory for iou_loss.2']
  #allocation5 [shape = 'u32[2048]{0}', space=vmem, size = 0x2000, scoped, tag = 'scoped memory for iou_loss.2']
  #allocation6 [shape = 'u32[2048]{0}', space=vmem, size = 0x2000, scoped, tag = 'scoped memory for iou_loss.2']
  %s0 = inlined_call_operand.vmem [shape: f32[8,8], index: 0, kind: input, shape index: {}]
  %s1 = inlined_call_operand.<no memory space> [shape: f32[], index: 1, kind: input, shape index: {}]
  %s2 = inlined_call_operand.hbm [shape: f32[1,1], index: 2, kind: output, shape index: {}]
  %s3 = sld [smem:[#allocation0]]
  $region22: #{iou_loss.2} parent=0
    _
  %s5 = ssub.s32 1, %s3
  %s6 = scalar_select 0, %s5, %s3
  %v7 = vstv %s1
  $region1: #{iou_loss.2} parent=0
    #allocation7 [shape = 'u8[512]{0}', space=vmem, size = 0x400, scoped, tag = 'output window, operand 0, single buffered']
    #allocation8 [shape = 's32[1]{0}', space=sflag, size = 0x4, scoped, tag = 'scoped memory for iou_loss.2']
    #allocation9 [shape = 'u8[4096]{0}', space=vmem, size = 0x1000, dematerialized = true, scoped, tag = 'FusionAdapter Buffer %fusion.1 = f32[8,128]{1,0:T(8,128)} fusion(%param_0.4, %param_1.3), kind=kLoop, calls=%fused_computation.2.clone, metadata={op_name="jit(iou_loss)/jit(_pad)/pad" stack_frame_id=9}']
    %8 = vsyncpa [#allocation8], 0
    // Predicated region
    $region2: #{iou_loss.2} parent=1 // pred_check
      _
    $region3: #{iou_loss.2} parent=1 // pred_check_branch
      %10 = sbr.rel (0) target = $region5
    $region4: #{iou_loss.2} parent=1 // pred_region
      _
    $region5: #{iou_loss.2} parent=1 // pred_fallthru
      _
    %v11 = vld [vmem:[%s0] sm:$0xff]
    %v12 = vlaneseq
    %v13 = vand.u32 %v12, 127
    %vm15 = vcmp.lt.s32.totalorder %v13, 8
    %v16 = vsel %vm15, %v11, %v7
    %s18 = ssub.s32 256, 1
    %19 = vst [vmem:[#allocation9] sm:%s18] %v16
    %p20 = scmp.eq.s32.totalorder 0, 0
    // Predicated region
    $region6: #{iou_loss.2} parent=1 // pred_check
      %p21 = pneg %p20
    $region7: #{iou_loss.2} parent=1 // pred_check_branch
      %23 = sbr.rel (%p21) target = $region9
    $region8: #{iou_loss.2} parent=1 // pred_region
      %vm24 = vcmask 0
      %25 = vst.msk [vmem:[#allocation7] sm:$0x1] %vm24, 0.0
    $region9: #{iou_loss.2} parent=1 // pred_fallthru
      _
    %v26 = vld [vmem:[#allocation9] sm:$0xff]
    %v28 = vrot.slane %v26, 4
    %v30 = vmin.f32 %v26, %v28
    %v31 = vmax.f32 %v26, %v28
    %v33 = vrot.slane %v31, 6
    %v35 = vsub.f32 %v30, %v33
    %v36 = vmax.f32 %v35, 0.0
    %v38 = vrot.slane %v36, 1
    %v40 = vmul.f32 %v36, %v38
    %v41 = vrot.slane %v26, 6
    %v43 = vsub.f32 %v26, %v41
    %v45 = vrot.slane %v43, 1
    %v47 = vmul.f32 %v43, %v45
    %v49 = vrot.slane %v47, 4
    %v51 = vadd.f32 %v47, %v49
    %v52 = vsub.f32 %v51, %v40
    %v53 = vadd.f32 %v52, 1e-07
    %v54 = vrcp.pop %v53
    %v55 = vmul.f32 %v40, %v54
    %v57 = vrot.slane %v30, 6
    %v59 = vsub.f32 %v31, %v57
    %v61 = vrot.slane %v59, 1
    %v63 = vmul.f32 %v59, %v61
    %v64 = vadd.f32 %v63, 1e-07
    %v65 = vsub.f32 %v64, %v53
    %v66 = vrcp.pop %v64
    %v67 = vmul.f32 %v65, %v66
    %v68 = vsub.f32 %v55, %v67
    %v69 = vlaneseq
    %v70 = vand.u32 %v69, 127
    %s71 = smul.u32 0, 128
    %v72 = vstv %s71
    %v73 = vadd.s32 %v70, %v72
    %vm74 = vcmp.lt.s32.totalorder %v73, 8
    %v75 = vsel %vm74, %v68, 0.0
    %vm76 = vcmask 1042434
    %v77 = vsel %vm76, %v75, 0.0
    %78 = vadd.xlane.f32.xlu0 %v77
    %v79 = vpop.xlane.xlu0 %78
    %v80 = vld [vmem:[#allocation7] sm:$0x1]
    %v82 = vlaneseq
    %v83 = vshrl.u32 %v82, 7
    %v84 = vsub.s32 2, %v83
    %v85 = vrot.slane %v79, %v84
    %v87 = vadd.f32 %v80, %v85
    %vm88 = vcmask 0
    %89 = vst.msk [vmem:[#allocation7] sm:$0x1] %vm88, %v87
    // Predicated region
    $region10: #{iou_loss.2} parent=1 // pred_check
      %p90 = pneg %p20
    $region11: #{iou_loss.2} parent=1 // pred_check_branch
      %92 = sbr.rel (%p90) target = $region13
    $region12: #{iou_loss.2} parent=1 // pred_region
      %v93 = vld [vmem:[#allocation7] sm:$0x1]
      %v94 = vsub.f32 8.0, %v93
      %v95 = vmul.f32 %v94, 0.125
      %96 = vst.msk [vmem:[#allocation7] sm:$0x1] %vm88, %v95
    $region13: #{iou_loss.2} parent=1 // pred_fallthru
      _
    // Predicated region
    $region14: #{iou_loss.2} parent=1 // pred_check
      _
    $region15: #{iou_loss.2} parent=1 // pred_check_branch
      %98 = sbr.rel (0) target = $region17
    $region16: #{iou_loss.2} parent=1 // pred_region
      %s100 = ssub.s32 16, 16
      %101 = vsyncadd [#allocation8], %s100
      %s103 = sshll.u32 [#allocation7], 4
      %s104 = int_to_ptr.vmem [resolvable:$true] %s103
      %106 = dma.vmem_to_hbm [thread:$0]  %s104, 16, %s2, [#allocation8]
    $region17: #{iou_loss.2} parent=1 // pred_fallthru
      _
    // Predicated region
    $region18: #{iou_loss.2} parent=1 // pred_check
      _
    $region19: #{iou_loss.2} parent=1 // pred_check_branch
      %108 = sbr.rel (0) target = $region21
    $region20: #{iou_loss.2} parent=1 // pred_region
      %109 = dma.done [#allocation8], 16
    $region21: #{iou_loss.2} parent=1 // pred_fallthru
      _
    %110 = vsyncpa [#allocation8], 1

</llo_original>
